<compile_context>
chip_gen: v6e
topology: v6e:2x2x1
jax: 0.10.0
libtpu: 0.0.40
codegen_flags: <defaults>
</compile_context>

<pallas_src>
import jax
import jax.numpy as jnp
from jax.experimental import pallas as pl
from jax.experimental.pallas import tpu as pltpu


def _mlp_kernel(x_ref, w1_ref, b1_ref, w2_ref, b2_ref, o_ref):
    # layer1: x @ W1 + b1  (MXU, f32 accumulate)
    h = jnp.dot(x_ref[...], w1_ref[...], preferred_element_type=jnp.float32)
    h = h + b1_ref[...]                      # b1 is (1, hidden), broadcasts over the batch tile
    # LeakyReLU, default negative_slope = 0.01
    h = jnp.where(h > 0, h, 0.01 * h)
    # dropout (eval mode) = identity
    # TODO(synk): training-mode dropout would need pltpu.prng_seed/prng_random_bits masking + 1/(1-p) scaling.
    # layer2: h @ W2 + b2 -> unpadded (TILE_B, num_vms) store (edge rows masked by Pallas)
    out = jnp.dot(h, w2_ref[...], preferred_element_type=jnp.float32)
    o_ref[...] = (out + b2_ref[...]).astype(o_ref.dtype)


def ai_scheduler_forward(x, w1, b1, w2, b2, *, tile_b=4096):
    """x: (B, input_size); w1: (input_size, hidden); b1: (1, hidden);
    w2: (hidden, num_vms); b2: (1, num_vms). Returns (B, num_vms) float32.

    tile_b: batch rows per grid step (rounded to a multiple of 8). The tile is additionally
    capped so that, when the batch is large enough, there are at least 2 grid steps
    (so both TensorCores on v7x get batch tiles under dimension_semantics=("parallel",)).
    """
    B, K = x.shape
    H = w1.shape[1]
    N = w2.shape[1]

    # --- batch tiling: multiple of 8 (f32 sublane); >= 2 steps when B allows it ---
    tile_b = max(8, (tile_b // 8) * 8)
    half_b = max(8, (((B + 1) // 2 + 7) // 8) * 8)   # half the batch, rounded up to 8
    TILE_B = min(tile_b, half_b)
    grid = (pl.cdiv(B, TILE_B),)                     # edge block clipped/masked by Pallas

    flops = 2 * B * (K * H + H * N)
    bytes_accessed = 4 * (B * K + B * N + K * H + H + H * N + N)

    out = pl.pallas_call(
        _mlp_kernel,
        out_shape=jax.ShapeDtypeStruct((B, N), jnp.float32),
        grid=grid,
        in_specs=[
            pl.BlockSpec((TILE_B, K), lambda i: (i, 0)),   # x: streamed per batch tile
            pl.BlockSpec((K, H), lambda i: (0, 0)),        # W1: VMEM-resident
            pl.BlockSpec((1, H), lambda i: (0, 0)),        # b1: VMEM-resident
            pl.BlockSpec((H, N), lambda i: (0, 0)),        # W2: VMEM-resident (unpadded)
            pl.BlockSpec((1, N), lambda i: (0, 0)),        # b2: VMEM-resident (unpadded)
        ],
        out_specs=pl.BlockSpec((TILE_B, N), lambda i: (i, 0)),
        compiler_params=pltpu.CompilerParams(
            dimension_semantics=("parallel",),             # shard batch tiles across TCs (v7x)
            vmem_limit_bytes=32 * 1024 * 1024,
        ),
        cost_estimate=pl.CostEstimate(
            flops=flops, transcendentals=0, bytes_accessed=bytes_accessed),
    )(x, w1, b1, w2, b2)

    return out


def _reference(x, w1, b1, w2, b2):
    h = x @ w1 + b1
    h = jnp.where(h > 0, h, 0.01 * h)
    return h @ w2 + b2


if __name__ == "__main__":
    # Small shapes consistent with the module
    batch, input_size, hidden_size, num_vms = 8, 16, 32, 8

    key = jax.random.PRNGKey(0)
    kx, kw1, kb1, kw2, kb2, kx2 = jax.random.split(key, 6)

    x = jax.random.normal(kx, (batch, input_size), dtype=jnp.float32)
    # Deterministic parameter init (PyTorch-like uniform bounds, seeded)
    bound1 = 1.0 / (input_size ** 0.5)
    w1 = jax.random.uniform(kw1, (input_size, hidden_size), jnp.float32, -bound1, bound1)
    b1 = jax.random.uniform(kb1, (1, hidden_size), jnp.float32, -bound1, bound1)
    bound2 = 1.0 / (hidden_size ** 0.5)
    w2 = jax.random.uniform(kw2, (hidden_size, num_vms), jnp.float32, -bound2, bound2)
    b2 = jax.random.uniform(kb2, (1, num_vms), jnp.float32, -bound2, bound2)

    # 1) Module-sized batch (single grid step, blocks == full arrays)
    out = ai_scheduler_forward(x, w1, b1, w2, b2)
    out = jax.block_until_ready(out)
    ref = _reference(x, w1, b1, w2, b2)
    assert out.shape == (batch, num_vms)
    assert jnp.allclose(out, ref, atol=1e-5, rtol=1e-5), "mismatch vs reference (small batch)"

    # 2) Larger, non-multiple-of-tile batch exercising the multi-step grid + masked edge block
    big_batch = 1000
    xb = jax.random.normal(kx2, (big_batch, input_size), dtype=jnp.float32)
    out_b = ai_scheduler_forward(xb, w1, b1, w2, b2, tile_b=256)
    out_b = jax.block_until_ready(out_b)
    ref_b = _reference(xb, w1, b1, w2, b2)
    assert out_b.shape == (big_batch, num_vms)
    assert jnp.allclose(out_b, ref_b, atol=1e-5, rtol=1e-5), "mismatch vs reference (large batch)"

    print("KERNEL_OK")
</pallas_src>

<mosaic_0001>
module attributes {stable_mosaic.version = 11 : i64} {
  func.func @_mlp_kernel(%arg0: i32, %arg1: memref<8x16xf32, #tpu.memory_space<vmem>>, %arg2: memref<16x32xf32, #tpu.memory_space<vmem>>, %arg3: memref<1x32xf32, #tpu.memory_space<vmem>>, %arg4: memref<32x8xf32, #tpu.memory_space<vmem>>, %arg5: memref<1x8xf32, #tpu.memory_space<vmem>>, %arg6: memref<8x8xf32, #tpu.memory_space<vmem>>) attributes {dimension_semantics = [#tpu.dimension_semantics<parallel>], iteration_bounds = array<i64: 1>, scalar_prefetch = 0 : i64, scratch_operands = 0 : i64, tpu.core_type = #tpu.core_type<tc>, window_params = [{transform_indices = @transform_0, window_bounds = array<i64: 8, 16>}, {pipeline_mode = #tpu.pipeline_mode<synchronous>, transform_indices = @transform_1, window_bounds = array<i64: 16, 32>}, {pipeline_mode = #tpu.pipeline_mode<synchronous>, transform_indices = @transform_2, window_bounds = array<i64: 1, 32>}, {pipeline_mode = #tpu.pipeline_mode<synchronous>, transform_indices = @transform_3, window_bounds = array<i64: 32, 8>}, {pipeline_mode = #tpu.pipeline_mode<synchronous>, transform_indices = @transform_4, window_bounds = array<i64: 1, 8>}, {transform_indices = @transform_5, window_bounds = array<i64: 8, 8>}]} {
    %c0 = arith.constant 0 : index
    %c0_0 = arith.constant 0 : index
    %0 = vector.load %arg1[%c0, %c0_0] : memref<8x16xf32, #tpu.memory_space<vmem>>, vector<8x16xf32>
    %c0_1 = arith.constant 0 : index
    %c0_2 = arith.constant 0 : index
    %1 = vector.load %arg2[%c0_1, %c0_2] : memref<16x32xf32, #tpu.memory_space<vmem>>, vector<16x32xf32>
    %cst = arith.constant dense<0.000000e+00> : vector<8x32xf32>
    %2 = tpu.matmul %0, %1, %cst {dimension_numbers = #tpu.dot_dimension_numbers<[1], [0], [0], [1], [0, 0, 1, 1], [], []>} : vector<8x16xf32>, vector<16x32xf32>, vector<8x32xf32> -> vector<8x32xf32>
    %c0_3 = arith.constant 0 : index
    %c0_4 = arith.constant 0 : index
    %3 = vector.load %arg3[%c0_3, %c0_4] : memref<1x32xf32, #tpu.memory_space<vmem>>, vector<1x32xf32>
    %4 = vector.broadcast %3 : vector<1x32xf32> to vector<8x32xf32>
    %5 = arith.addf %2, %4 : vector<8x32xf32>
    %cst_5 = arith.constant 0.000000e+00 : f32
    %6 = vector.broadcast %cst_5 : f32 to vector<8x32xf32>
    %7 = arith.cmpf ogt, %5, %6 : vector<8x32xf32>
    %cst_6 = arith.constant 0.00999999977 : f32
    %8 = vector.broadcast %cst_6 : f32 to vector<8x32xf32>
    %9 = arith.mulf %8, %5 : vector<8x32xf32>
    %10 = arith.select %7, %5, %9 : vector<8x32xi1>, vector<8x32xf32>
    %c0_7 = arith.constant 0 : index
    %c0_8 = arith.constant 0 : index
    %11 = vector.load %arg4[%c0_7, %c0_8] : memref<32x8xf32, #tpu.memory_space<vmem>>, vector<32x8xf32>
    %cst_9 = arith.constant dense<0.000000e+00> : vector<8x8xf32>
    %12 = tpu.matmul %10, %11, %cst_9 {dimension_numbers = #tpu.dot_dimension_numbers<[1], [0], [0], [1], [0, 0, 1, 1], [], []>} : vector<8x32xf32>, vector<32x8xf32>, vector<8x8xf32> -> vector<8x8xf32>
    %c0_10 = arith.constant 0 : index
    %c0_11 = arith.constant 0 : index
    %13 = vector.load %arg5[%c0_10, %c0_11] : memref<1x8xf32, #tpu.memory_space<vmem>>, vector<1x8xf32>
    %14 = vector.broadcast %13 : vector<1x8xf32> to vector<8x8xf32>
    %15 = arith.addf %12, %14 : vector<8x8xf32>
    %c0_12 = arith.constant 0 : index
    %c0_13 = arith.constant 0 : index
    %16 = vector.load %arg6[%c0_12, %c0_13] : memref<8x8xf32, #tpu.memory_space<vmem>>, vector<8x8xf32>
    tpu.vector_store %arg6[%c0_12, %c0_13], %15 {strides = array<i32>} : memref<8x8xf32, #tpu.memory_space<vmem>>, vector<8x8xf32>,
    return
  }
  func.func @transform_0(%arg0: i32) -> (i32, i32) {
    %c0_i32 = arith.constant 0 : i32
    %c0_i32_0 = arith.constant 0 : i32
    return %arg0, %c0_i32 : i32, i32
  }
  func.func @transform_1(%arg0: i32) -> (i32, i32) {
    %c0_i32 = arith.constant 0 : i32
    %c0_i32_0 = arith.constant 0 : i32
    %c0_i32_1 = arith.constant 0 : i32
    return %c0_i32, %c0_i32_0 : i32, i32
  }
  func.func @transform_2(%arg0: i32) -> (i32, i32) {
    %c0_i32 = arith.constant 0 : i32
    %c0_i32_0 = arith.constant 0 : i32
    %c0_i32_1 = arith.constant 0 : i32
    return %c0_i32, %c0_i32_0 : i32, i32
  }
  func.func @transform_3(%arg0: i32) -> (i32, i32) {
    %c0_i32 = arith.constant 0 : i32
    %c0_i32_0 = arith.constant 0 : i32
    %c0_i32_1 = arith.constant 0 : i32
    return %c0_i32, %c0_i32_0 : i32, i32
  }
  func.func @transform_4(%arg0: i32) -> (i32, i32) {
    %c0_i32 = arith.constant 0 : i32
    %c0_i32_0 = arith.constant 0 : i32
    %c0_i32_1 = arith.constant 0 : i32
    return %c0_i32, %c0_i32_0 : i32, i32
  }
  func.func @transform_5(%arg0: i32) -> (i32, i32) {
    %c0_i32 = arith.constant 0 : i32
    %c0_i32_0 = arith.constant 0 : i32
    return %arg0, %c0_i32 : i32, i32
  }
}

</mosaic_0001>

<llo_original>
// kernel: tpu_custom_call.1
$region0: #{tpu_custom_call.1}
  #allocation0 [shape = 'u32[]', space=smem, size = 0x4, offset = 0x4, fixed_abs, tag = 'smem constant byte address 0x4 - core index']
  #allocation1 [shape = 'u32[144,128]{1,0:T(1,128)}', space=vmem, size = 0x12000, scoped, tag = 'internal scratch']
  %s0 = inlined_call_operand.vmem [shape: f32[8,16], index: 0, kind: input, shape index: {}]
  %s1 = inlined_call_operand.vmem [shape: f32[16,32], index: 1, kind: input, shape index: {}]
  %s2 = inlined_call_operand.vmem [shape: f32[1,32], index: 2, kind: input, shape index: {}]
  %s3 = inlined_call_operand.vmem [shape: f32[32,8], index: 3, kind: input, shape index: {}]
  %s4 = inlined_call_operand.vmem [shape: f32[1,8], index: 4, kind: input, shape index: {}]
  %s5 = inlined_call_operand.hbm [shape: f32[8,8], index: 5, kind: output, shape index: {}]
  %s6 = sld [smem:[#allocation0]]
  $region30: #{tpu_custom_call.1} parent=0
    _
  %s8 = ssub.s32 1, %s6
  %s9 = scalar_select 0, %s8, %s6
  $region1: #{tpu_custom_call.1} parent=0
    #allocation2 [shape = 'u8[4096]{0}', space=vmem, size = 0x1000, scoped, tag = 'output window, operand 0, single buffered']
    #allocation3 [shape = 's32[1]{0}', space=sflag, size = 0x4, scoped, tag = 'scoped memory for tpu_custom_call.1']
    %10 = vsyncpa [#allocation3], 0
    // Predicated region
    $region2: #{tpu_custom_call.1} parent=1 // pred_check
      _
    $region3: #{tpu_custom_call.1} parent=1 // pred_check_branch
      %12 = sbr.rel (0) target = $region5
    $region4: #{tpu_custom_call.1} parent=1 // pred_region
      _
    $region5: #{tpu_custom_call.1} parent=1 // pred_fallthru
      _
    // Predicated region
    $region6: #{tpu_custom_call.1} parent=1 // pred_check
      _
    $region7: #{tpu_custom_call.1} parent=1 // pred_check_branch
      %14 = sbr.rel (0) target = $region9
    $region8: #{tpu_custom_call.1} parent=1 // pred_region
      _
    $region9: #{tpu_custom_call.1} parent=1 // pred_fallthru
      _
    // Predicated region
    $region10: #{tpu_custom_call.1} parent=1 // pred_check
      _
    $region11: #{tpu_custom_call.1} parent=1 // pred_check_branch
      %16 = sbr.rel (0) target = $region13
    $region12: #{tpu_custom_call.1} parent=1 // pred_region
      _
    $region13: #{tpu_custom_call.1} parent=1 // pred_fallthru
      _
    // Predicated region
    $region14: #{tpu_custom_call.1} parent=1 // pred_check
      _
    $region15: #{tpu_custom_call.1} parent=1 // pred_check_branch
      %18 = sbr.rel (0) target = $region17
    $region16: #{tpu_custom_call.1} parent=1 // pred_region
      _
    $region17: #{tpu_custom_call.1} parent=1 // pred_fallthru
      _
    // Predicated region
    $region18: #{tpu_custom_call.1} parent=1 // pred_check
      _
    $region19: #{tpu_custom_call.1} parent=1 // pred_check_branch
      %20 = sbr.rel (0) target = $region21
    $region20: #{tpu_custom_call.1} parent=1 // pred_region
      _
    $region21: #{tpu_custom_call.1} parent=1 // pred_fallthru
      _
    %v21 = vld [vmem:[%s0] sm:$0xff]
    %v22 = vld [vmem:[%s1] sm:$0xff]
    %v23 = vld [vmem:[%s1 + $0x8] sm:$0xff]
    %v24 = vld [vmem:[%s2] sm:$0x1]
    %v26 = vlaneseq
    %v27 = vshrl.u32 %v26, 7
    %v28 = vsub.s32 0, %v27
    %v29 = vrot.slane %v24, %v28
    %vm31 = vcmask 130048
    %v33 = vsel %vm31, %v21, 0
    %35 = vmatprep.subr.mxu0 0.0
    %36 = vmatpush1.msra.mxu0 0.0
    %37 = vmatprep.subr.mxu0 0.0
    %38 = vmatpush1.msra.mxu0 0.0
    %39 = vmatprep.subr.mxu0 0.0
    %40 = vmatpush1.msra.mxu0 0.0
    %41 = vmatprep.subr.mxu0 0.0
    %42 = vmatpush1.msra.mxu0 0.0
    %43 = vmatprep.subr.mxu0 0.0
    %44 = vmatpush1.msra.mxu0 0.0
    %45 = vmatprep.subr.mxu0 0.0
    %46 = vmatpush1.msra.mxu0 0.0
    %47 = vmatprep.subr.mxu0 0.0
    %48 = vmatpush1.msra.mxu0 0.0
    %49 = vmatprep.subr.mxu0 0.0
    %50 = vmatpush1.msra.mxu0 0.0
    %51 = vmatprep.subr.mxu0 0.0
    %52 = vmatpush1.msra.mxu0 0.0
    %53 = vmatprep.subr.mxu0 0.0
    %54 = vmatpush1.msra.mxu0 0.0
    %55 = vmatprep.subr.mxu0 0.0
    %56 = vmatpush1.msra.mxu0 0.0
    %57 = vmatprep.subr.mxu0 0.0
    %58 = vmatpush1.msra.mxu0 0.0
    %59 = vmatprep.subr.mxu0 0.0
    %60 = vmatpush1.msra.mxu0 0.0
    %61 = vmatprep.subr.mxu0 0.0
    %62 = vmatpush1.msra.mxu0 0.0
    %63 = vmatprep.subr.mxu0 0.0
    %64 = vmatpush1.msra.mxu0 %v23
    %65 = vmatprep.subr.mxu0 0.0
    %66 = vmatpush1.msra.mxu0 %v22
    %67 = vmatprep.subr.mxu0 0.0
    %68 = vmatpush2.msra.mxu0 0.0
    %69 = vmatprep.subr.mxu0 0.0
    %70 = vmatpush2.msra.mxu0 0.0
    %71 = vmatprep.subr.mxu0 0.0
    %72 = vmatpush2.msra.mxu0 0.0
    %73 = vmatprep.subr.mxu0 0.0
    %74 = vmatpush2.msra.mxu0 0.0
    %75 = vmatprep.subr.mxu0 0.0
    %76 = vmatpush2.msra.mxu0 0.0
    %77 = vmatprep.subr.mxu0 0.0
    %78 = vmatpush2.msra.mxu0 0.0
    %79 = vmatprep.subr.mxu0 0.0
    %80 = vmatpush2.msra.mxu0 0.0
    %81 = vmatprep.subr.mxu0 0.0
    %82 = vmatpush2.msra.mxu0 0.0
    %83 = vmatprep.subr.mxu0 0.0
    %84 = vmatpush2.msra.mxu0 0.0
    %85 = vmatprep.subr.mxu0 0.0
    %86 = vmatpush2.msra.mxu0 0.0
    %87 = vmatprep.subr.mxu0 0.0
    %88 = vmatpush2.msra.mxu0 0.0
    %89 = vmatprep.subr.mxu0 0.0
    %90 = vmatpush2.msra.mxu0 0.0
    %91 = vmatprep.subr.mxu0 0.0
    %92 = vmatpush2.msra.mxu0 0.0
    %93 = vmatprep.subr.mxu0 0.0
    %94 = vmatpush2.msra.mxu0 0.0
    %95 = vmatprep.subr.mxu0 0.0
    %96 = vmatpush2.msra.mxu0 0.0
    %97 = vmatprep.subr.mxu0 0.0
    %98 = vmatpush2.msra.mxu0 0.0
    %99 = vmatprep.mubr.f32.mxu0 0.0
    %100 = vmatmul.mubr.f32.gmra.mxu0 %v33
    %v101 = vpop.f32.mrf.mxu0
    %v102 = vadd.f32 %v29, %v101
    %v103 = vpop.f32.mrf.mxu0
    %104 = vdwg.mxu0
    %vm105 = vcmp.gt.f32.partialorder %v102, 0.0
    %v106 = vmul.f32 %v102, 0.01
    %v107 = vsel %vm105, %v102, %v106
    %v108 = vld [vmem:[%s3] sm:$0xff]
    %v109 = vld [vmem:[%s3 + $0x8] sm:$0xff]
    %v110 = vld [vmem:[%s3 + $0x10] sm:$0xff]
    %v111 = vld [vmem:[%s3 + $0x18] sm:$0xff]
    %v112 = vld [vmem:[%s4] sm:$0x1]
    %v114 = vlaneseq
    %v115 = vshrl.u32 %v114, 7
    %v116 = vsub.s32 0, %v115
    %v117 = vrot.slane %v112, %v116
    %vm119 = vcmask 261120
    %v121 = vsel %vm119, %v107, 0
    %123 = vmatprep.subr.mxu0 0.0
    %124 = vmatpush1.msra.mxu0 0.0
    %125 = vmatprep.subr.mxu0 0.0
    %126 = vmatpush1.msra.mxu0 0.0
    %127 = vmatprep.subr.mxu0 0.0
    %128 = vmatpush1.msra.mxu0 0.0
    %129 = vmatprep.subr.mxu0 0.0
    %130 = vmatpush1.msra.mxu0 0.0
    %131 = vmatprep.subr.mxu0 0.0
    %132 = vmatpush1.msra.mxu0 0.0
    %133 = vmatprep.subr.mxu0 0.0
    %134 = vmatpush1.msra.mxu0 0.0
    %135 = vmatprep.subr.mxu0 0.0
    %136 = vmatpush1.msra.mxu0 0.0
    %137 = vmatprep.subr.mxu0 0.0
    %138 = vmatpush1.msra.mxu0 0.0
    %139 = vmatprep.subr.mxu0 0.0
    %140 = vmatpush1.msra.mxu0 0.0
    %141 = vmatprep.subr.mxu0 0.0
    %142 = vmatpush1.msra.mxu0 0.0
    %143 = vmatprep.subr.mxu0 0.0
    %144 = vmatpush1.msra.mxu0 0.0
    %145 = vmatprep.subr.mxu0 0.0
    %146 = vmatpush1.msra.mxu0 0.0
    %147 = vmatprep.subr.mxu0 0.0
    %148 = vmatpush1.msra.mxu0 %v111
    %149 = vmatprep.subr.mxu0 0.0
    %150 = vmatpush1.msra.mxu0 %v110
    %151 = vmatprep.subr.mxu0 0.0
    %152 = vmatpush1.msra.mxu0 %v109
    %153 = vmatprep.subr.mxu0 0.0
    %154 = vmatpush1.msra.mxu0 %v108
    %155 = vmatprep.subr.mxu0 0.0
    %156 = vmatpush2.msra.mxu0 0.0
    %157 = vmatprep.subr.mxu0 0.0
    %158 = vmatpush2.msra.mxu0 0.0
    %159 = vmatprep.subr.mxu0 0.0
    %160 = vmatpush2.msra.mxu0 0.0
    %161 = vmatprep.subr.mxu0 0.0
    %162 = vmatpush2.msra.mxu0 0.0
    %163 = vmatprep.subr.mxu0 0.0
    %164 = vmatpush2.msra.mxu0 0.0
    %165 = vmatprep.subr.mxu0 0.0
    %166 = vmatpush2.msra.mxu0 0.0
    %167 = vmatprep.subr.mxu0 0.0
    %168 = vmatpush2.msra.mxu0 0.0
    %169 = vmatprep.subr.mxu0 0.0
    %170 = vmatpush2.msra.mxu0 0.0
    %171 = vmatprep.subr.mxu0 0.0
    %172 = vmatpush2.msra.mxu0 0.0
    %173 = vmatprep.subr.mxu0 0.0
    %174 = vmatpush2.msra.mxu0 0.0
    %175 = vmatprep.subr.mxu0 0.0
    %176 = vmatpush2.msra.mxu0 0.0
    %177 = vmatprep.subr.mxu0 0.0
    %178 = vmatpush2.msra.mxu0 0.0
    %179 = vmatprep.subr.mxu0 0.0
    %180 = vmatpush2.msra.mxu0 0.0
    %181 = vmatprep.subr.mxu0 0.0
    %182 = vmatpush2.msra.mxu0 0.0
    %183 = vmatprep.subr.mxu0 0.0
    %184 = vmatpush2.msra.mxu0 0.0
    %185 = vmatprep.subr.mxu0 0.0
    %186 = vmatpush2.msra.mxu0 0.0
    %187 = vmatprep.mubr.f32.mxu0 0.0
    %188 = vmatmul.mubr.f32.gmra.mxu0 %v121
    %v189 = vpop.f32.mrf.mxu0
    %v190 = vadd.f32 %v117, %v189
    %v191 = vpop.f32.mrf.mxu0
    %192 = vdwg.mxu0
    %vm193 = vcmask 64512
    %194 = vst.msk [vmem:[#allocation2] sm:$0xff] %vm193, %v190
    // Predicated region
    $region22: #{tpu_custom_call.1} parent=1 // pred_check
      _
    $region23: #{tpu_custom_call.1} parent=1 // pred_check_branch
      %196 = sbr.rel (0) target = $region25
    $region24: #{tpu_custom_call.1} parent=1 // pred_region
      %s198 = ssub.s32 128, 128
      %199 = vsyncadd [#allocation3], %s198
      %s201 = sshll.u32 [#allocation2], 4
      %s202 = int_to_ptr.vmem [resolvable:$true] %s201
      %204 = dma.vmem_to_hbm [thread:$0]  %s202, 128, %s5, [#allocation3]
    $region25: #{tpu_custom_call.1} parent=1 // pred_fallthru
      _
    // Predicated region
    $region26: #{tpu_custom_call.1} parent=1 // pred_check
      _
    $region27: #{tpu_custom_call.1} parent=1 // pred_check_branch
      %206 = sbr.rel (0) target = $region29
    $region28: #{tpu_custom_call.1} parent=1 // pred_region
      %207 = dma.done [#allocation3], 128
    $region29: #{tpu_custom_call.1} parent=1 // pred_fallthru
      _
    %208 = vsyncpa [#allocation3], 1

</llo_original>
